<compile_context>
chip_gen: v7x
topology: tpu7x:2x2x1
jax: 0.10.0
libtpu: 0.0.40
codegen_flags: <defaults>
</compile_context>

<pallas_src>
import jax
import jax.numpy as jnp
from jax.experimental import pallas as pl
from jax.experimental.pallas import tpu as pltpu


def mlp_res_pallas(x, params, *, tn=1024, compute_dtype=jnp.bfloat16,
                   out_dtype=jnp.float32):
    """x: (B, in_dim, N).  Returns (B, out_dim, N) in out_dtype.

    tn:            lane tile over N (rounded to a multiple of 128).
    compute_dtype: bf16 (default, MXU-friendly, f32 accumulation) or None/f32
                   for an exact-f32 path.
    out_dtype:     output dtype (f32 default; bf16 to cut output HBM traffic).
    """
    w1, b1, w2, b2, ws, bs = params
    hidden_dim, in_dim = w1.shape
    out_dim = w2.shape[0]
    B, C, N = x.shape
    assert C == in_dim

    # Stack conv_1 and conv_shortcut weights on the LHS (shared RHS = x):
    # one matmul with M = hidden+out, then a free static row-slice in-kernel.
    wstack = jnp.concatenate([w1, ws], axis=0)                 # (hid+out, in)
    b1c = b1.reshape(hidden_dim, 1).astype(jnp.float32)
    bcat = (b2 + bs).reshape(out_dim, 1).astype(jnp.float32)   # folded bias

    cdt = jnp.float32 if compute_dtype is None else compute_dtype
    x = x.astype(cdt)
    wstack = wstack.astype(cdt)
    w2c = w2.astype(cdt)

    # Lane tile over N: multiple of 128, clamped to padded N, then shrunk (if
    # possible) so the parallel grid has >= 4 steps (keeps both v7x TCs busy;
    # harmless on single-TC v5e/v6e).
    tn_eff = max(128, (tn // 128) * 128)
    n_pad128 = -(-N // 128) * 128
    tn_eff = min(tn_eff, n_pad128)
    while tn_eff > 128 and B * (-(-N // tn_eff)) < 4:
        tn_eff = max(128, (tn_eff // 2) // 128 * 128)

    Np = -(-N // tn_eff) * tn_eff
    if Np != N:
        # Zero-pad; padded lanes get bias-derived (non-zero) outputs that are
        # sliced off below — correctness unaffected.
        x = jnp.pad(x, ((0, 0), (0, 0), (0, Np - N)))

    def kernel(x_ref, wstack_ref, b1_ref, w2_ref, bcat_ref, o_ref):
        # x_ref:      (1, in_dim, tn)        streamed x tile
        # wstack_ref: (hidden+out, in_dim)   resident [W1; Ws]
        # b1_ref:     (hidden, 1)
        # w2_ref:     (out, hidden)          resident
        # bcat_ref:   (out, 1)               b2 + bs
        xt = x_ref[0]                                            # (in, tn)
        # Single M=(hidden+out) MXU matmul; f32 accumulation.
        hs = jnp.dot(wstack_ref[...], xt,
                     preferred_element_type=jnp.float32)         # (hid+out, tn)
        h_pre = hs[:hidden_dim, :]                               # static slice
        shortcut = hs[hidden_dim:, :]                            # (out, tn) f32
        h = jnp.maximum(h_pre + b1_ref[...], 0.0).astype(cdt)    # (hid, tn)
        out = jnp.dot(w2_ref[...], h,
                      preferred_element_type=jnp.float32)        # (out, tn)
        o_ref[0] = (out + shortcut + bcat_ref[...]).astype(o_ref.dtype)

    grid = (B, Np // tn_eff)
    out = pl.pallas_call(
        kernel,
        out_shape=jax.ShapeDtypeStruct((B, out_dim, Np), out_dtype),
        grid_spec=pltpu.PrefetchScalarGridSpec(
            num_scalar_prefetch=0,
            grid=grid,
            in_specs=[
                pl.BlockSpec((1, in_dim, tn_eff), lambda b, j: (b, 0, j)),      # x
                pl.BlockSpec((hidden_dim + out_dim, in_dim),
                             lambda b, j: (0, 0)),                              # [W1;Ws]
                pl.BlockSpec((hidden_dim, 1), lambda b, j: (0, 0)),             # b1
                pl.BlockSpec((out_dim, hidden_dim), lambda b, j: (0, 0)),       # W2
                pl.BlockSpec((out_dim, 1), lambda b, j: (0, 0)),                # b2+bs
            ],
            out_specs=pl.BlockSpec((1, out_dim, tn_eff), lambda b, j: (b, 0, j)),
        ),
        compiler_params=pltpu.CompilerParams(
            dimension_semantics=("parallel", "parallel")),
    )(x, wstack, b1c, w2c, bcat)

    return out[:, :, :N] if Np != N else out


def init_params(key, in_dim, hidden_dim, out_dim):
    """Deterministic init matching PyTorch Conv1d(k=1): W is (out, in), b (out,)."""
    k1, k2, k3, k4, k5, k6 = jax.random.split(key, 6)
    s1 = 1.0 / jnp.sqrt(in_dim)
    s2 = 1.0 / jnp.sqrt(hidden_dim)
    w1 = jax.random.uniform(k1, (hidden_dim, in_dim), jnp.float32, -s1, s1)
    b1 = jax.random.uniform(k2, (hidden_dim,), jnp.float32, -s1, s1)
    w2 = jax.random.uniform(k3, (out_dim, hidden_dim), jnp.float32, -s2, s2)
    b2 = jax.random.uniform(k4, (out_dim,), jnp.float32, -s2, s2)
    ws = jax.random.uniform(k5, (out_dim, in_dim), jnp.float32, -s1, s1)
    bs = jax.random.uniform(k6, (out_dim,), jnp.float32, -s1, s1)
    return (w1, b1, w2, b2, ws, bs)


def mlp_res_ref(x, params):
    """Pure-JAX reference with identical semantics (for verification)."""
    w1, b1, w2, b2, ws, bs = params
    h = jnp.maximum(jnp.einsum('oi,bin->bon', w1, x) + b1[None, :, None], 0.0)
    out = jnp.einsum('oh,bhn->bon', w2, h) + b2[None, :, None]
    sc = jnp.einsum('oi,bin->bon', ws, x) + bs[None, :, None]
    return out + sc


if __name__ == "__main__":
    key = jax.random.PRNGKey(0)
    kx, kp = jax.random.split(key)

    # Module defaults are 128-channel; N chosen non-multiple-of-128 to
    # exercise padding + tile clamping.
    B, in_dim, hidden_dim, out_dim, N = 2, 128, 128, 128, 400
    x = jax.random.normal(kx, (B, in_dim, N), dtype=jnp.float32)
    params = init_params(kp, in_dim, hidden_dim, out_dim)

    ref = mlp_res_ref(x, params)

    # Default bf16-compute path (f32 accumulation, f32 output).
    out_bf16 = jax.block_until_ready(mlp_res_pallas(x, params))
    assert out_bf16.shape == (B, out_dim, N)
    assert jnp.allclose(out_bf16, ref, atol=2e-1, rtol=2e-1)

    # Exact f32 path: tight match against the reference.
    out_f32 = jax.block_until_ready(
        mlp_res_pallas(x, params, compute_dtype=None))
    assert out_f32.shape == (B, out_dim, N)
    assert jnp.allclose(out_f32, ref, atol=1e-4, rtol=1e-4)

    print("KERNEL_OK")
</pallas_src>

<mosaic_0001>
module attributes {stable_mosaic.version = 11 : i64} {
  func.func @kernel(%arg0: i32, %arg1: i32, %arg2: memref<1x128x256xbf16, #tpu.memory_space<vmem>>, %arg3: memref<256x128xbf16, #tpu.memory_space<vmem>>, %arg4: memref<128x1xf32, #tpu.memory_space<vmem>>, %arg5: memref<128x128xbf16, #tpu.memory_space<vmem>>, %arg6: memref<128x1xf32, #tpu.memory_space<vmem>>, %arg7: memref<1x128x256xf32, #tpu.memory_space<vmem>>) attributes {dimension_semantics = [#tpu.dimension_semantics<parallel>, #tpu.dimension_semantics<parallel>], iteration_bounds = array<i64: 2, 2>, scalar_prefetch = 0 : i64, scratch_operands = 0 : i64, tpu.core_type = #tpu.core_type<tc>, window_params = [{transform_indices = @transform_0, window_bounds = array<i64: 1, 128, 256>}, {pipeline_mode = #tpu.pipeline_mode<synchronous>, transform_indices = @transform_1, window_bounds = array<i64: 256, 128>}, {pipeline_mode = #tpu.pipeline_mode<synchronous>, transform_indices = @transform_2, window_bounds = array<i64: 128, 1>}, {pipeline_mode = #tpu.pipeline_mode<synchronous>, transform_indices = @transform_3, window_bounds = array<i64: 128, 128>}, {pipeline_mode = #tpu.pipeline_mode<synchronous>, transform_indices = @transform_4, window_bounds = array<i64: 128, 1>}, {transform_indices = @transform_5, window_bounds = array<i64: 1, 128, 256>}]} {
    %c0 = arith.constant 0 : index
    %c0_0 = arith.constant 0 : index
    %c0_1 = arith.constant 0 : index
    %0 = vector.load %arg2[%c0, %c0_0, %c0_1] : memref<1x128x256xbf16, #tpu.memory_space<vmem>>, vector<1x128x256xbf16>
    %1 = vector.shape_cast %0 : vector<1x128x256xbf16> to vector<128x256xbf16>
    %c0_2 = arith.constant 0 : index
    %c0_3 = arith.constant 0 : index
    %2 = vector.load %arg3[%c0_2, %c0_3] : memref<256x128xbf16, #tpu.memory_space<vmem>>, vector<256x128xbf16>
    %cst = arith.constant dense<0.000000e+00> : vector<256x256xf32>
    %3 = tpu.matmul %2, %1, %cst {dimension_numbers = #tpu.dot_dimension_numbers<[1], [0], [0], [1], [0, 0, 1, 1], [], []>} : vector<256x128xbf16>, vector<128x256xbf16>, vector<256x256xf32> -> vector<256x256xf32>
    %4 = vector.extract_strided_slice %3 {offsets = [0, 0], sizes = [128, 256], strides = [1, 1]} : vector<256x256xf32> to vector<128x256xf32>
    %5 = vector.extract_strided_slice %3 {offsets = [128, 0], sizes = [128, 256], strides = [1, 1]} : vector<256x256xf32> to vector<128x256xf32>
    %c0_4 = arith.constant 0 : index
    %c0_5 = arith.constant 0 : index
    %6 = vector.load %arg4[%c0_4, %c0_5] : memref<128x1xf32, #tpu.memory_space<vmem>>, vector<128x1xf32>
    %7 = vector.broadcast %6 : vector<128x1xf32> to vector<128x256xf32>
    %8 = arith.addf %4, %7 : vector<128x256xf32>
    %cst_6 = arith.constant 0.000000e+00 : f32
    %9 = vector.broadcast %cst_6 : f32 to vector<128x256xf32>
    %10 = arith.maximumf %8, %9 : vector<128x256xf32>
    %11 = arith.truncf %10 : vector<128x256xf32> to vector<128x256xbf16>
    %c0_7 = arith.constant 0 : index
    %c0_8 = arith.constant 0 : index
    %12 = vector.load %arg5[%c0_7, %c0_8] : memref<128x128xbf16, #tpu.memory_space<vmem>>, vector<128x128xbf16>
    %cst_9 = arith.constant dense<0.000000e+00> : vector<128x256xf32>
    %13 = tpu.matmul %12, %11, %cst_9 {dimension_numbers = #tpu.dot_dimension_numbers<[1], [0], [0], [1], [0, 0, 1, 1], [], []>} : vector<128x128xbf16>, vector<128x256xbf16>, vector<128x256xf32> -> vector<128x256xf32>
    %14 = arith.addf %13, %5 : vector<128x256xf32>
    %c0_10 = arith.constant 0 : index
    %c0_11 = arith.constant 0 : index
    %15 = vector.load %arg6[%c0_10, %c0_11] : memref<128x1xf32, #tpu.memory_space<vmem>>, vector<128x1xf32>
    %16 = vector.broadcast %15 : vector<128x1xf32> to vector<128x256xf32>
    %17 = arith.addf %14, %16 : vector<128x256xf32>
    %c0_12 = arith.constant 0 : index
    %c0_13 = arith.constant 0 : index
    %c0_14 = arith.constant 0 : index
    %18 = vector.load %arg7[%c0_12, %c0_13, %c0_14] : memref<1x128x256xf32, #tpu.memory_space<vmem>>, vector<1x128x256xf32>
    %19 = vector.shape_cast %18 : vector<1x128x256xf32> to vector<128x256xf32>
    %20 = vector.shape_cast %17 : vector<128x256xf32> to vector<1x128x256xf32>
    tpu.vector_store %arg7[%c0_12, %c0_13, %c0_14], %20 {strides = array<i32>} : memref<1x128x256xf32, #tpu.memory_space<vmem>>, vector<1x128x256xf32>,
    return
  }
  func.func @transform_0(%arg0: i32, %arg1: i32) -> (i32, i32, i32) {
    %c0_i32 = arith.constant 0 : i32
    %c0_i32_0 = arith.constant 0 : i32
    return %arg0, %c0_i32, %arg1 : i32, i32, i32
  }
  func.func @transform_1(%arg0: i32, %arg1: i32) -> (i32, i32) {
    %c0_i32 = arith.constant 0 : i32
    %c0_i32_0 = arith.constant 0 : i32
    %c0_i32_1 = arith.constant 0 : i32
    return %c0_i32, %c0_i32_0 : i32, i32
  }
  func.func @transform_2(%arg0: i32, %arg1: i32) -> (i32, i32) {
    %c0_i32 = arith.constant 0 : i32
    %c0_i32_0 = arith.constant 0 : i32
    %c0_i32_1 = arith.constant 0 : i32
    return %c0_i32, %c0_i32_0 : i32, i32
  }
  func.func @transform_3(%arg0: i32, %arg1: i32) -> (i32, i32) {
    %c0_i32 = arith.constant 0 : i32
    %c0_i32_0 = arith.constant 0 : i32
    %c0_i32_1 = arith.constant 0 : i32
    return %c0_i32, %c0_i32_0 : i32, i32
  }
  func.func @transform_4(%arg0: i32, %arg1: i32) -> (i32, i32) {
    %c0_i32 = arith.constant 0 : i32
    %c0_i32_0 = arith.constant 0 : i32
    %c0_i32_1 = arith.constant 0 : i32
    return %c0_i32, %c0_i32_0 : i32, i32
  }
  func.func @transform_5(%arg0: i32, %arg1: i32) -> (i32, i32, i32) {
    %c0_i32 = arith.constant 0 : i32
    %c0_i32_0 = arith.constant 0 : i32
    return %arg0, %c0_i32, %arg1 : i32, i32, i32
  }
}

</mosaic_0001>

<llo_original>
// kernel: tpu_custom_call.1
$region0: #{tpu_custom_call.1}
  #allocation0 [shape = 'u32[]', space=smem, size = 0x4, offset = 0x4, fixed_abs, tag = 'smem constant byte address 0x4 - core index']
  #allocation1 [shape = 'u32[144,128]{1,0:T(1,128)}', space=vmem, size = 0x12000, scoped, tag = 'internal scratch']
  %s0 = inlined_call_operand.hbm [shape: bf16[2,128,512], index: 0, kind: input, shape index: {}]
  %s1 = inlined_call_operand.vmem [shape: bf16[256,128], index: 1, kind: input, shape index: {}]
  %s2 = inlined_call_operand.vmem [shape: f32[128,1], index: 2, kind: input, shape index: {}]
  %s3 = inlined_call_operand.vmem [shape: bf16[128,128], index: 3, kind: input, shape index: {}]
  %s4 = inlined_call_operand.vmem [shape: f32[128,1], index: 4, kind: input, shape index: {}]
  %s5 = inlined_call_operand.hbm [shape: f32[2,128,512], index: 5, kind: output, shape index: {}]
  %s6 = sld [smem:[#allocation0]]
  $region57: #{tpu_custom_call.1} parent=0
    _
  %s8 = ssub.s32 1, %s6
  %s9 = scalar_select 0, %s8, %s6
  $region1: #{tpu_custom_call.1} parent=0
    #allocation2 [shape = 'u8[131072]{0}', space=vmem, size = 0x20000, scoped, tag = 'input window, operand 0']
    #allocation3 [shape = 's32[2]{0}', space=sflag, size = 0x8, scoped, tag = 'scoped memory for tpu_custom_call.1']
    #allocation4 [shape = 's32[2]{0}', space=sflag, size = 0x8, scoped, tag = 'scoped memory for tpu_custom_call.1']
    #allocation5 [shape = 'u8[262144]{0}', space=vmem, size = 0x40000, scoped, tag = 'output window, operand 0']
    %10 = vsyncpa [#allocation3], 0
    %s11 = scalar_lea.sflag [#allocation3], 1
    %12 = vsyncpa %s11, 0
    %13 = vsyncpa [#allocation4], 0
    %s14 = scalar_lea.sflag [#allocation4], 1
    %15 = vsyncpa %s14, 0
    loop: start=0, step=1, limit=6
    $region2: #{tpu_custom_call.1} parent=1 // loop_pre_header
      _
    $region3: #{tpu_custom_call.1} parent=1 // loop_header
      %s17 = sphi 0, %s21
      %p18 = scmp.ge.s32.totalorder %s17, 6
      %s24 = sphi 0, %s36
      %s25 = sphi 0, %s32
      %s26 = sphi 0, %s24
      %s27 = sphi 0, %s25
      %s28 = sphi 0, %s26
      %s29 = sphi 0, %s27
      %s41 = sphi 0, %s43
      %s44 = sphi 0, %s41
      %s45 = sphi 0, %s44
      %s61 = sphi 0, %s45
      %s65 = sphi 0, %s65
      %s67 = sphi 0, %s65
      %s68 = sphi 0, %s67
      %s82 = sphi 0, %s68
      %s86 = sphi 0, %s86
      %s88 = sphi 0, %s86
      %s89 = sphi 0, %s88
      %s103 = sphi 0, %s89
      %s107 = sphi 0, %s107
      %s109 = sphi 0, %s107
      %s110 = sphi 0, %s109
      %s124 = sphi 0, %s110
      %s128 = sphi 0, %s128
      %s130 = sphi 0, %s128
      %s131 = sphi 0, %s130
      %s145 = sphi 0, %s131
      %s153 = sphi 0, %s155
      %s156 = sphi 0, %s153
      %s157 = sphi 0, %s156
      %s173 = sphi 0, %s157
    $region4: #{tpu_custom_call.1} parent=1 // loop_header_branch
      %20 = sbr.rel (%p18) target = $region8
    $region5: #{tpu_custom_call.1} parent=1 // loop_body
      %s22 = ssub.s32 %s17, 1
      %s23 = ssub.s32 %s17, 2
      %s30 = sadd.s32 1, %s25
      %p31 = scmp.ge.s32.totalorder %s30, 2
      %s32 = scalar_select %p31, 0, %s30
      %s33 = sadd.s32 1, %s24
      %s34 = scalar_select %p31, %s33, %s24
      %p35 = scmp.ge.s32.totalorder %s34, 2
      %s36 = scalar_select %p35, 0, %s34
      %s37 = ssub.s32 %s24, %s36
      %s38 = ssub.s32 %s25, %s32
      %s39 = sor.u32 %s37, %s38
      %p40 = scmp.eq.s32.totalorder %s39, 0
      %s42 = sadd.s32 %s41, 1
      %s43 = scalar_select %p40, %s41, %s42
      %p46 = pneg %p40
      %p47 = scmp.eq.s32.totalorder %s17, 3
      %p48 = por %p46, %p47
      %p49 = scmp.ne.s32.totalorder %s41, %s44
      %p50 = scmp.eq.s32.totalorder %s17, 0
      %p51 = por %p49, %p50
      %p52 = scmp.ne.s32.totalorder %s41, %s44
      %p53 = scmp.eq.s32.totalorder %s22, 3
      %p54 = por %p52, %p53
      %p55 = scmp.ne.s32.totalorder %s44, %s45
      %p56 = scmp.eq.s32.totalorder %s22, 0
      %p57 = por %p55, %p56
      %p58 = scmp.ne.s32.totalorder %s44, %s45
      %p59 = scmp.eq.s32.totalorder %s23, 3
      %p60 = por %p58, %p59
      %p62 = scmp.ne.s32.totalorder %s45, %s61
      %p63 = scmp.eq.s32.totalorder %s23, 0
      %p64 = por %p62, %p63
      %s66 = sadd.s32 %s65, 1
      %p69 = scmp.eq.s32.totalorder %s17, 3
      %p70 = scmp.ne.s32.totalorder %s65, %s67
      %p71 = scmp.eq.s32.totalorder %s17, 0
      %p72 = por %p70, %p71
      %p73 = scmp.ne.s32.totalorder %s65, %s67
      %p74 = scmp.eq.s32.totalorder %s22, 3
      %p75 = por %p73, %p74
      %p76 = scmp.ne.s32.totalorder %s67, %s68
      %p77 = scmp.eq.s32.totalorder %s22, 0
      %p78 = por %p76, %p77
      %p79 = scmp.ne.s32.totalorder %s67, %s68
      %p80 = scmp.eq.s32.totalorder %s23, 3
      %p81 = por %p79, %p80
      %p83 = scmp.ne.s32.totalorder %s68, %s82
      %p84 = scmp.eq.s32.totalorder %s23, 0
      %p85 = por %p83, %p84
      %s87 = sadd.s32 %s86, 1
      %p90 = scmp.eq.s32.totalorder %s17, 3
      %p91 = scmp.ne.s32.totalorder %s86, %s88
      %p92 = scmp.eq.s32.totalorder %s17, 0
      %p93 = por %p91, %p92
      %p94 = scmp.ne.s32.totalorder %s86, %s88
      %p95 = scmp.eq.s32.totalorder %s22, 3
      %p96 = por %p94, %p95
      %p97 = scmp.ne.s32.totalorder %s88, %s89
      %p98 = scmp.eq.s32.totalorder %s22, 0
      %p99 = por %p97, %p98
      %p100 = scmp.ne.s32.totalorder %s88, %s89
      %p101 = scmp.eq.s32.totalorder %s23, 3
      %p102 = por %p100, %p101
      %p104 = scmp.ne.s32.totalorder %s89, %s103
      %p105 = scmp.eq.s32.totalorder %s23, 0
      %p106 = por %p104, %p105
      %s108 = sadd.s32 %s107, 1
      %p111 = scmp.eq.s32.totalorder %s17, 3
      %p112 = scmp.ne.s32.totalorder %s107, %s109
      %p113 = scmp.eq.s32.totalorder %s17, 0
      %p114 = por %p112, %p113
      %p115 = scmp.ne.s32.totalorder %s107, %s109
      %p116 = scmp.eq.s32.totalorder %s22, 3
      %p117 = por %p115, %p116
      %p118 = scmp.ne.s32.totalorder %s109, %s110
      %p119 = scmp.eq.s32.totalorder %s22, 0
      %p120 = por %p118, %p119
      %p121 = scmp.ne.s32.totalorder %s109, %s110
      %p122 = scmp.eq.s32.totalorder %s23, 3
      %p123 = por %p121, %p122
      %p125 = scmp.ne.s32.totalorder %s110, %s124
      %p126 = scmp.eq.s32.totalorder %s23, 0
      %p127 = por %p125, %p126
      %s129 = sadd.s32 %s128, 1
      %p132 = scmp.eq.s32.totalorder %s17, 3
      %p133 = scmp.ne.s32.totalorder %s128, %s130
      %p134 = scmp.eq.s32.totalorder %s17, 0
      %p135 = por %p133, %p134
      %p136 = scmp.ne.s32.totalorder %s128, %s130
      %p137 = scmp.eq.s32.totalorder %s22, 3
      %p138 = por %p136, %p137
      %p139 = scmp.ne.s32.totalorder %s130, %s131
      %p140 = scmp.eq.s32.totalorder %s22, 0
      %p141 = por %p139, %p140
      %p142 = scmp.ne.s32.totalorder %s130, %s131
      %p143 = scmp.eq.s32.totalorder %s23, 3
      %p144 = por %p142, %p143
      %p146 = scmp.ne.s32.totalorder %s131, %s145
      %p147 = scmp.eq.s32.totalorder %s23, 0
      %p148 = por %p146, %p147
      %s149 = ssub.s32 %s24, %s36
      %s150 = ssub.s32 %s25, %s32
      %s151 = sor.u32 %s149, %s150
      %p152 = scmp.eq.s32.totalorder %s151, 0
      %s154 = sadd.s32 %s153, 1
      %s155 = scalar_select %p152, %s153, %s154
      %p158 = pneg %p152
      %p159 = scmp.eq.s32.totalorder %s17, 3
      %p160 = por %p158, %p159
      %p161 = scmp.ne.s32.totalorder %s153, %s156
      %p162 = scmp.eq.s32.totalorder %s17, 0
      %p163 = por %p161, %p162
      %p164 = scmp.ne.s32.totalorder %s153, %s156
      %p165 = scmp.eq.s32.totalorder %s22, 3
      %p166 = por %p164, %p165
      %p167 = scmp.ne.s32.totalorder %s156, %s157
      %p168 = scmp.eq.s32.totalorder %s22, 0
      %p169 = por %p167, %p168
      %p170 = scmp.ne.s32.totalorder %s156, %s157
      %p171 = scmp.eq.s32.totalorder %s23, 3
      %p172 = por %p170, %p171
      %p174 = scmp.ne.s32.totalorder %s157, %s173
      %p175 = scmp.eq.s32.totalorder %s23, 0
      %p176 = por %p174, %p175
      %p177 = scmp.le.s32.totalorder 1, %s17
      %p178 = scmp.lt.s32.totalorder %s17, 5
      %p179 = pnand %p177, %p178
      %p180 = pneg %p179
      // Predicated region
      $region9: #{tpu_custom_call.1} parent=5 // pred_check
        _
      $region10: #{tpu_custom_call.1} parent=5 // pred_check_branch
        %182 = sbr.rel (%p179) target = $region12
      $region11: #{tpu_custom_call.1} parent=5 // pred_region
        %s183 = ssub.s32 %s17, 1
        // Predicated region
        $region13: #{tpu_custom_call.1} parent=11 // pred_check
          %p184 = pneg %p78
        $region14: #{tpu_custom_call.1} parent=11 // pred_check_branch
          %186 = sbr.rel (%p184) target = $region16
        $region15: #{tpu_custom_call.1} parent=11 // pred_region
          _
        $region16: #{tpu_custom_call.1} parent=11 // pred_fallthru
          _
        // Predicated region
        $region17: #{tpu_custom_call.1} parent=11 // pred_check
          %p187 = pneg %p99
        $region18: #{tpu_custom_call.1} parent=11 // pred_check_branch
          %189 = sbr.rel (%p187) target = $region20
        $region19: #{tpu_custom_call.1} parent=11 // pred_region
          _
        $region20: #{tpu_custom_call.1} parent=11 // pred_fallthru
          _
        // Predicated region
        $region21: #{tpu_custom_call.1} parent=11 // pred_check
          %p190 = pneg %p120
        $region22: #{tpu_custom_call.1} parent=11 // pred_check_branch
          %192 = sbr.rel (%p190) target = $region24
        $region23: #{tpu_custom_call.1} parent=11 // pred_region
          _
        $region24: #{tpu_custom_call.1} parent=11 // pred_fallthru
          _
        // Predicated region
        $region25: #{tpu_custom_call.1} parent=11 // pred_check
          %p193 = pneg %p141
        $region26: #{tpu_custom_call.1} parent=11 // pred_check_branch
          %195 = sbr.rel (%p193) target = $region28
        $region27: #{tpu_custom_call.1} parent=11 // pred_region
          _
        $region28: #{tpu_custom_call.1} parent=11 // pred_fallthru
          _
      $region12: #{tpu_custom_call.1} parent=5 // pred_fallthru
        _
      %p196 = scmp.lt.s32.totalorder %s17, 4
      // Predicated region
      $region29: #{tpu_custom_call.1} parent=5 // pred_check
        %p197 = pneg %p196
      $region30: #{tpu_custom_call.1} parent=5 // pred_check_branch
        %199 = sbr.rel (%p197) target = $region32
      $region31: #{tpu_custom_call.1} parent=5 // pred_region
        // Predicated region
        $region33: #{tpu_custom_call.1} parent=31 // pred_check
          %p200 = pneg %p51
        $region34: #{tpu_custom_call.1} parent=31 // pred_check_branch
          %202 = sbr.rel (%p200) target = $region36
        $region35: #{tpu_custom_call.1} parent=31 // pred_region
          %s203 = sand.u32 %s41, 1
          %s204 = scalar_lea.sflag [#allocation3], %s203
          %s205 = sand.u32 %s41, 1
          %s206 = smul.addr %s205, 128
          %s207 = scalar_lea.vmem [#allocation2], %s206
          %s208 = smul.u32 2, %s25
          %s210 = ssub.s32 2048, 2048
          %211 = vsyncadd %s204, %s210
          %s212 = smul.addr %s24, 64
          %s213 = sadd.s32 %s208, %s212
          %s214 = smul.addr %s213, 64
          %s215 = scalar_lea.hbm %s0, %s214
          %s216 = sshll.u32 %s207, 4
          %s217 = int_to_ptr.vmem [resolvable:$true] %s216
          %222 = dma.hbm_to_vmem [thread:$0]  %s215, 2048, %s217, %s204, 256, 128, 8
        $region36: #{tpu_custom_call.1} parent=31 // pred_fallthru
          _
      $region32: #{tpu_custom_call.1} parent=5 // pred_fallthru
        _
      %p223 = scmp.le.s32.totalorder 1, %s17
      %p224 = scmp.lt.s32.totalorder %s17, 5
      %p225 = pnand %p223, %p224
      %p226 = pneg %p225
      // Predicated region
      $region37: #{tpu_custom_call.1} parent=5 // pred_check
        _
      $region38: #{tpu_custom_call.1} parent=5 // pred_check_branch
        %228 = sbr.rel (%p225) target = $region40
      $region39: #{tpu_custom_call.1} parent=5 // pred_region
        %s229 = ssub.s32 %s17, 1
        %s230 = sand.u32 %s44, 1
        %s231 = scalar_lea.sflag [#allocation3], %s230
        %s232 = sand.u32 %s44, 1
        %s233 = smul.addr %s232, 128
        %s234 = scalar_lea.vmem [#allocation2], %s233
        // Predicated region
        $region41: #{tpu_custom_call.1} parent=39 // pred_check
          %p235 = pneg %p57
        $region42: #{tpu_custom_call.1} parent=39 // pred_check_branch
          %237 = sbr.rel (%p235) target = $region44
        $region43: #{tpu_custom_call.1} parent=39 // pred_region
          %238 = dma.done %s231, 2048
        $region44: #{tpu_custom_call.1} parent=39 // pred_fallthru
          _
        %s239 = sand.u32 %s44, 1
        %s240 = scalar_lea.sflag [#allocation3], %s239
        %s241 = sand.u32 %s44, 1
        %s242 = smul.addr %s241, 128
        %s243 = scalar_lea.vmem [#allocation2], %s242
        %p244 = pneg %p57
        %p245 = pneg %p54
        %p246 = pneg %p78
        %p247 = pneg %p75
        %p248 = pneg %p99
        %p249 = pneg %p96
        %p250 = pneg %p120
        %p251 = pneg %p117
        %p252 = pneg %p141
        %p253 = pneg %p138
        %p254 = pneg %p169
        %p255 = pneg %p166
        %s256 = sand.u32 %s156, 1
        %s257 = scalar_lea.sflag [#allocation4], %s256
        %s258 = sand.u32 %s156, 1
        %s259 = smul.addr %s258, 256
        %s260 = scalar_lea.vmem [#allocation5], %s259
        %s261 = smul.u32 2, %s27
        %s262 = smul.u32 2, %s27
        %v264 = vld [vmem:[%s234] sm:$0xff]
        %v265 = vld [vmem:[%s234 + $0x8] sm:$0xff]
        %v266 = vld [vmem:[%s234 + $0x10] sm:$0xff]
        %v267 = vld [vmem:[%s234 + $0x18] sm:$0xff]
        %v268 = vld [vmem:[%s234 + $0x20] sm:$0xff]
        %v269 = vld [vmem:[%s234 + $0x28] sm:$0xff]
        %v270 = vld [vmem:[%s234 + $0x30] sm:$0xff]
        %v271 = vld [vmem:[%s234 + $0x38] sm:$0xff]
        %v272 = vld [vmem:[%s234 + $0x40] sm:$0xff]
        %v273 = vld [vmem:[%s234 + $0x48] sm:$0xff]
        %v274 = vld [vmem:[%s234 + $0x50] sm:$0xff]
        %v275 = vld [vmem:[%s234 + $0x58] sm:$0xff]
        %v276 = vld [vmem:[%s234 + $0x60] sm:$0xff]
        %v277 = vld [vmem:[%s234 + $0x68] sm:$0xff]
        %v278 = vld [vmem:[%s234 + $0x70] sm:$0xff]
        %v279 = vld [vmem:[%s234 + $0x78] sm:$0xff]
        %v280 = vld [vmem:[%s1] sm:$0xf]
        %v281 = vld [vmem:[%s1 + $0x4] sm:$0xf]
        %v282 = vld [vmem:[%s1 + $0x8] sm:$0xf]
        %v283 = vld [vmem:[%s1 + $0xc] sm:$0xf]
        %v284 = vld [vmem:[%s1 + $0x10] sm:$0xf]
        %v285 = vld [vmem:[%s1 + $0x14] sm:$0xf]
        %v286 = vld [vmem:[%s1 + $0x18] sm:$0xf]
        %v287 = vld [vmem:[%s1 + $0x1c] sm:$0xf]
        %v288 = vld [vmem:[%s1 + $0x20] sm:$0xf]
        %v289 = vld [vmem:[%s1 + $0x24] sm:$0xf]
        %v290 = vld [vmem:[%s1 + $0x28] sm:$0xf]
        %v291 = vld [vmem:[%s1 + $0x2c] sm:$0xf]
        %v292 = vld [vmem:[%s1 + $0x30] sm:$0xf]
        %v293 = vld [vmem:[%s1 + $0x34] sm:$0xf]
        %v294 = vld [vmem:[%s1 + $0x38] sm:$0xf]
        %v295 = vld [vmem:[%s1 + $0x3c] sm:$0xf]
        %v296 = vld [vmem:[%s1 + $0x40] sm:$0xf]
        %v297 = vld [vmem:[%s1 + $0x44] sm:$0xf]
        %v298 = vld [vmem:[%s1 + $0x48] sm:$0xf]
        %v299 = vld [vmem:[%s1 + $0x4c] sm:$0xf]
        %v300 = vld [vmem:[%s1 + $0x50] sm:$0xf]
        %v301 = vld [vmem:[%s1 + $0x54] sm:$0xf]
        %v302 = vld [vmem:[%s1 + $0x58] sm:$0xf]
        %v303 = vld [vmem:[%s1 + $0x5c] sm:$0xf]
        %v304 = vld [vmem:[%s1 + $0x60] sm:$0xf]
        %v305 = vld [vmem:[%s1 + $0x64] sm:$0xf]
        %v306 = vld [vmem:[%s1 + $0x68] sm:$0xf]
        %v307 = vld [vmem:[%s1 + $0x6c] sm:$0xf]
        %v308 = vld [vmem:[%s1 + $0x70] sm:$0xf]
        %v309 = vld [vmem:[%s1 + $0x74] sm:$0xf]
        %v310 = vld [vmem:[%s1 + $0x78] sm:$0xf]
        %v311 = vld [vmem:[%s1 + $0x7c] sm:$0xf]
        %v344 = vunpack.c.l.b16 %v280
        %v345 = vunpack.c.l.b16 %v281
        %v346 = vunpack.c.l.b16 %v282
        %v347 = vunpack.c.l.b16 %v283
        %v348 = vunpack.c.l.b16 %v284
        %v349 = vunpack.c.l.b16 %v285
        %v350 = vunpack.c.l.b16 %v286
        %v351 = vunpack.c.l.b16 %v287
        %v352 = vunpack.c.l.b16 %v288
        %v353 = vunpack.c.l.b16 %v289
        %v354 = vunpack.c.l.b16 %v290
        %v355 = vunpack.c.l.b16 %v291
        %v356 = vunpack.c.l.b16 %v292
        %v357 = vunpack.c.l.b16 %v293
        %v358 = vunpack.c.l.b16 %v294
        %v359 = vunpack.c.l.b16 %v295
        %v360 = vunpack.c.l.b16 %v296
        %v361 = vunpack.c.l.b16 %v297
        %v362 = vunpack.c.l.b16 %v298
        %v363 = vunpack.c.l.b16 %v299
        %v364 = vunpack.c.l.b16 %v300
        %v365 = vunpack.c.l.b16 %v301
        %v366 = vunpack.c.l.b16 %v302
        %v367 = vunpack.c.l.b16 %v303
        %v368 = vunpack.c.l.b16 %v304
        %v369 = vunpack.c.l.b16 %v305
        %v370 = vunpack.c.l.b16 %v306
        %v371 = vunpack.c.l.b16 %v307
        %v372 = vunpack.c.l.b16 %v308
        %v373 = vunpack.c.l.b16 %v309
        %v374 = vunpack.c.l.b16 %v310
        %v375 = vunpack.c.l.b16 %v311
        %v376 = vpack.c.b16 %v345, %v344
        %v377 = vpack.c.b16 %v347, %v346
        %v378 = vpack.c.b16 %v349, %v348
        %v379 = vpack.c.b16 %v351, %v350
        %v380 = vpack.c.b16 %v353, %v352
        %v381 = vpack.c.b16 %v355, %v354
        %v382 = vpack.c.b16 %v357, %v356
        %v383 = vpack.c.b16 %v359, %v358
        %v384 = vpack.c.b16 %v361, %v360
        %v385 = vpack.c.b16 %v363, %v362
        %v386 = vpack.c.b16 %v365, %v364
        %v387 = vpack.c.b16 %v367, %v366
        %v388 = vpack.c.b16 %v369, %v368
        %v389 = vpack.c.b16 %v371, %v370
        %v390 = vpack.c.b16 %v373, %v372
        %v391 = vpack.c.b16 %v375, %v374
        %v424 = vunpack.c.l.b16 %v264
        %v425 = vunpack.c.h.b16 %v264
        %v426 = vunpack.c.l.b16 %v265
        %v427 = vunpack.c.h.b16 %v265
        %v428 = vunpack.c.l.b16 %v266
        %v429 = vunpack.c.h.b16 %v266
        %v430 = vunpack.c.l.b16 %v267
        %v431 = vunpack.c.h.b16 %v267
        %v432 = vunpack.c.l.b16 %v268
        %v433 = vunpack.c.h.b16 %v268
        %v434 = vunpack.c.l.b16 %v269
        %v435 = vunpack.c.h.b16 %v269
        %v436 = vunpack.c.l.b16 %v270
        %v437 = vunpack.c.h.b16 %v270
        %v438 = vunpack.c.l.b16 %v271
        %v439 = vunpack.c.h.b16 %v271
        %v440 = vunpack.c.l.b16 %v272
        %v441 = vunpack.c.h.b16 %v272
        %v442 = vunpack.c.l.b16 %v273
        %v443 = vunpack.c.h.b16 %v273
        %v444 = vunpack.c.l.b16 %v274
        %v445 = vunpack.c.h.b16 %v274
        %v446 = vunpack.c.l.b16 %v275
        %v447 = vunpack.c.h.b16 %v275
        %v448 = vunpack.c.l.b16 %v276
        %v449 = vunpack.c.h.b16 %v276
        %v450 = vunpack.c.l.b16 %v277
        %v451 = vunpack.c.h.b16 %v277
        %v452 = vunpack.c.l.b16 %v278
        %v453 = vunpack.c.h.b16 %v278
        %v454 = vunpack.c.l.b16 %v279
        %v455 = vunpack.c.h.b16 %v279
        %v456 = vpack.c.b16 %v426, %v424
        %v457 = vpack.c.b16 %v427, %v425
        %v458 = vpack.c.b16 %v430, %v428
        %v459 = vpack.c.b16 %v431, %v429
        %v460 = vpack.c.b16 %v434, %v432
        %v461 = vpack.c.b16 %v435, %v433
        %v462 = vpack.c.b16 %v438, %v436
        %v463 = vpack.c.b16 %v439, %v437
        %v464 = vpack.c.b16 %v442, %v440
        %v465 = vpack.c.b16 %v443, %v441
        %v466 = vpack.c.b16 %v446, %v444
        %v467 = vpack.c.b16 %v447, %v445
        %v468 = vpack.c.b16 %v450, %v448
        %v469 = vpack.c.b16 %v451, %v449
        %v470 = vpack.c.b16 %v454, %v452
        %v471 = vpack.c.b16 %v455, %v453
        %488 = vmatprep.subr.bf16.mxu0 %v457
        %489 = vmatpush1.bf16.msra.mxu0 %v456
        %490 = vmatprep.subr.bf16.mxu0 %v459
        %491 = vmatpush1.bf16.msra.mxu0 %v458
        %492 = vmatprep.subr.bf16.mxu0 %v461
        %493 = vmatpush1.bf16.msra.mxu0 %v460
        %494 = vmatprep.subr.bf16.mxu0 %v463
        %495 = vmatpush1.bf16.msra.mxu0 %v462
        %496 = vmatprep.subr.bf16.mxu0 %v465
        %497 = vmatpush1.bf16.msra.mxu0 %v464
        %498 = vmatprep.subr.bf16.mxu0 %v467
        %499 = vmatpush1.bf16.msra.mxu0 %v466
        %500 = vmatprep.subr.bf16.mxu0 %v469
        %501 = vmatpush1.bf16.msra.mxu0 %v468
        %502 = vmatprep.subr.bf16.mxu0 %v471
        %503 = vmatpush1.bf16.msra.mxu0 %v470
        %504 = vmatprep.subr.bf16.mxu0 0
        %505 = vmatpush1.bf16.msra.mxu0 0
        %506 = vmatprep.subr.bf16.mxu0 0
        %507 = vmatpush1.bf16.msra.mxu0 0
        %508 = vmatprep.subr.bf16.mxu0 0
        %509 = vmatpush1.bf16.msra.mxu0 0
        %510 = vmatprep.subr.bf16.mxu0 0
        %511 = vmatpush1.bf16.msra.mxu0 0
        %512 = vmatprep.subr.bf16.mxu0 0
        %513 = vmatpush1.bf16.msra.mxu0 0
        %514 = vmatprep.subr.bf16.mxu0 0
        %515 = vmatpush1.bf16.msra.mxu0 0
        %516 = vmatprep.subr.bf16.mxu0 0
        %517 = vmatpush1.bf16.msra.mxu0 0
        %518 = vmatprep.subr.bf16.mxu0 0
        %519 = vmatpush1.bf16.msra.mxu0 0
        %520 = vmatprep.mubr.bf16.mxu0 0
        %521 = vmatmul.mubr.bf16.gmra.mrb[0].mxu0 %v376
        %v522 = vpop.f32.mrb[0].mxu0
        %v523 = vadd.f32 0.0, %v522
        %v524 = vpop.f32.mrb[0].mxu0
        %v525 = vadd.f32 0.0, %v524
        %v526 = vpop.f32.mrb[0].mxu0
        %v527 = vadd.f32 0.0, %v526
        %v528 = vpop.f32.mrb[0].mxu0
        %v529 = vadd.f32 0.0, %v528
        %530 = vmatprep.mubr.bf16.mxu0 0
        %531 = vmatmul.mubr.bf16.gmra.mrb[0].mxu0 %v377
        %v532 = vpop.f32.mrb[0].mxu0
        %v533 = vadd.f32 0.0, %v532
        %v534 = vpop.f32.mrb[0].mxu0
        %v535 = vadd.f32 0.0, %v534
        %v536 = vpop.f32.mrb[0].mxu0
        %v537 = vadd.f32 0.0, %v536
        %v538 = vpop.f32.mrb[0].mxu0
        %v539 = vadd.f32 0.0, %v538
        %540 = vmatprep.mubr.bf16.mxu0 0
        %541 = vmatmul.mubr.bf16.gmra.mrb[0].mxu0 %v378
        %v542 = vpop.f32.mrb[0].mxu0
        %v543 = vadd.f32 0.0, %v542
        %v544 = vpop.f32.mrb[0].mxu0
        %v545 = vadd.f32 0.0, %v544
        %v546 = vpop.f32.mrb[0].mxu0
        %v547 = vadd.f32 0.0, %v546
        %v548 = vpop.f32.mrb[0].mxu0
        %v549 = vadd.f32 0.0, %v548
        %550 = vmatprep.mubr.bf16.mxu0 0
        %551 = vmatmul.mubr.bf16.gmra.mrb[0].mxu0 %v379
        %v552 = vpop.f32.mrb[0].mxu0
        %v553 = vadd.f32 0.0, %v552
        %v554 = vpop.f32.mrb[0].mxu0
        %v555 = vadd.f32 0.0, %v554
        %v556 = vpop.f32.mrb[0].mxu0
        %v557 = vadd.f32 0.0, %v556
        %v558 = vpop.f32.mrb[0].mxu0
        %v559 = vadd.f32 0.0, %v558
        %560 = vmatprep.mubr.bf16.mxu0 0
        %561 = vmatmul.mubr.bf16.gmra.mrb[0].mxu0 %v380
        %v562 = vpop.f32.mrb[0].mxu0
        %v563 = vadd.f32 0.0, %v562
        %v564 = vpop.f32.mrb[0].mxu0
        %v565 = vadd.f32 0.0, %v564
        %v566 = vpop.f32.mrb[0].mxu0
        %v567 = vadd.f32 0.0, %v566
        %v568 = vpop.f32.mrb[0].mxu0
        %v569 = vadd.f32 0.0, %v568
        %570 = vmatprep.mubr.bf16.mxu0 0
        %571 = vmatmul.mubr.bf16.gmra.mrb[0].mxu0 %v381
        %v572 = vpop.f32.mrb[0].mxu0
        %v573 = vadd.f32 0.0, %v572
        %v574 = vpop.f32.mrb[0].mxu0
        %v575 = vadd.f32 0.0, %v574
        %v576 = vpop.f32.mrb[0].mxu0
        %v577 = vadd.f32 0.0, %v576
        %v578 = vpop.f32.mrb[0].mxu0
        %v579 = vadd.f32 0.0, %v578
        %580 = vmatprep.mubr.bf16.mxu0 0
        %581 = vmatmul.mubr.bf16.gmra.mrb[0].mxu0 %v382
        %v582 = vpop.f32.mrb[0].mxu0
        %v583 = vadd.f32 0.0, %v582
        %v584 = vpop.f32.mrb[0].mxu0
        %v585 = vadd.f32 0.0, %v584
        %v586 = vpop.f32.mrb[0].mxu0
        %v587 = vadd.f32 0.0, %v586
        %v588 = vpop.f32.mrb[0].mxu0
        %v589 = vadd.f32 0.0, %v588
        %590 = vmatprep.mubr.bf16.mxu0 0
        %591 = vmatmul.mubr.bf16.gmra.mrb[0].mxu0 %v383
        %v592 = vpop.f32.mrb[0].mxu0
        %v593 = vadd.f32 0.0, %v592
        %v594 = vpop.f32.mrb[0].mxu0
        %v595 = vadd.f32 0.0, %v594
        %v596 = vpop.f32.mrb[0].mxu0
        %v597 = vadd.f32 0.0, %v596
        %v598 = vpop.f32.mrb[0].mxu0
        %v599 = vadd.f32 0.0, %v598
        %600 = vmatprep.mubr.bf16.mxu0 0
        %601 = vmatmul.mubr.bf16.gmra.mrb[0].mxu0 %v384
        %v602 = vpop.f32.mrb[0].mxu0
        %v603 = vadd.f32 0.0, %v602
        %v604 = vpop.f32.mrb[0].mxu0
        %v605 = vadd.f32 0.0, %v604
        %v606 = vpop.f32.mrb[0].mxu0
        %v607 = vadd.f32 0.0, %v606
        %v608 = vpop.f32.mrb[0].mxu0
        %v609 = vadd.f32 0.0, %v608
        %610 = vmatprep.mubr.bf16.mxu0 0
        %611 = vmatmul.mubr.bf16.gmra.mrb[0].mxu0 %v385
        %v612 = vpop.f32.mrb[0].mxu0
        %v613 = vadd.f32 0.0, %v612
        %v614 = vpop.f32.mrb[0].mxu0
        %v615 = vadd.f32 0.0, %v614
        %v616 = vpop.f32.mrb[0].mxu0
        %v617 = vadd.f32 0.0, %v616
        %v618 = vpop.f32.mrb[0].mxu0
        %v619 = vadd.f32 0.0, %v618
        %620 = vmatprep.mubr.bf16.mxu0 0
        %621 = vmatmul.mubr.bf16.gmra.mrb[0].mxu0 %v386
        %v622 = vpop.f32.mrb[0].mxu0
        %v623 = vadd.f32 0.0, %v622
        %v624 = vpop.f32.mrb[0].mxu0
        %v625 = vadd.f32 0.0, %v624
        %v626 = vpop.f32.mrb[0].mxu0
        %v627 = vadd.f32 0.0, %v626
        %v628 = vpop.f32.mrb[0].mxu0
        %v629 = vadd.f32 0.0, %v628
        %630 = vmatprep.mubr.bf16.mxu0 0
        %631 = vmatmul.mubr.bf16.gmra.mrb[0].mxu0 %v387
        %v632 = vpop.f32.mrb[0].mxu0
        %v633 = vadd.f32 0.0, %v632
        %v634 = vpop.f32.mrb[0].mxu0
        %v635 = vadd.f32 0.0, %v634
        %v636 = vpop.f32.mrb[0].mxu0
        %v637 = vadd.f32 0.0, %v636
        %v638 = vpop.f32.mrb[0].mxu0
        %v639 = vadd.f32 0.0, %v638
        %640 = vmatprep.mubr.bf16.mxu0 0
        %641 = vmatmul.mubr.bf16.gmra.mrb[0].mxu0 %v388
        %v642 = vpop.f32.mrb[0].mxu0
        %v643 = vadd.f32 0.0, %v642
        %v644 = vpop.f32.mrb[0].mxu0
        %v645 = vadd.f32 0.0, %v644
        %v646 = vpop.f32.mrb[0].mxu0
        %v647 = vadd.f32 0.0, %v646
        %v648 = vpop.f32.mrb[0].mxu0
        %v649 = vadd.f32 0.0, %v648
        %650 = vmatprep.mubr.bf16.mxu0 0
        %651 = vmatmul.mubr.bf16.gmra.mrb[0].mxu0 %v389
        %v652 = vpop.f32.mrb[0].mxu0
        %v653 = vadd.f32 0.0, %v652
        %v654 = vpop.f32.mrb[0].mxu0
        %v655 = vadd.f32 0.0, %v654
        %v656 = vpop.f32.mrb[0].mxu0
        %v657 = vadd.f32 0.0, %v656
        %v658 = vpop.f32.mrb[0].mxu0
        %v659 = vadd.f32 0.0, %v658
        %660 = vmatprep.mubr.bf16.mxu0 0
        %661 = vmatmul.mubr.bf16.gmra.mrb[0].mxu0 %v390
        %v662 = vpop.f32.mrb[0].mxu0
        %v663 = vadd.f32 0.0, %v662
        %v664 = vpop.f32.mrb[0].mxu0
        %v665 = vadd.f32 0.0, %v664
        %v666 = vpop.f32.mrb[0].mxu0
        %v667 = vadd.f32 0.0, %v666
        %v668 = vpop.f32.mrb[0].mxu0
        %v669 = vadd.f32 0.0, %v668
        %670 = vmatprep.mubr.bf16.mxu0 0
        %671 = vmatmul.mubr.bf16.gmra.mrb[0].mxu0 %v391
        %v672 = vpop.f32.mrb[0].mxu0
        %v673 = vadd.f32 0.0, %v672
        %v674 = vpop.f32.mrb[0].mxu0
        %v675 = vadd.f32 0.0, %v674
        %v676 = vpop.f32.mrb[0].mxu0
        %v677 = vadd.f32 0.0, %v676
        %v678 = vpop.f32.mrb[0].mxu0
        %v679 = vadd.f32 0.0, %v678
        %680 = vdwg.mxu0
        %v681 = vld [vmem:[%s2] sm:$0xff]
        %v682 = vld [vmem:[%s2 + $0x8] sm:$0xff]
        %v683 = vld [vmem:[%s2 + $0x10] sm:$0xff]
        %v684 = vld [vmem:[%s2 + $0x18] sm:$0xff]
        %v685 = vld [vmem:[%s2 + $0x20] sm:$0xff]
        %v686 = vld [vmem:[%s2 + $0x28] sm:$0xff]
        %v687 = vld [vmem:[%s2 + $0x30] sm:$0xff]
        %v688 = vld [vmem:[%s2 + $0x38] sm:$0xff]
        %v689 = vld [vmem:[%s2 + $0x40] sm:$0xff]
        %v690 = vld [vmem:[%s2 + $0x48] sm:$0xff]
        %v691 = vld [vmem:[%s2 + $0x50] sm:$0xff]
        %v692 = vld [vmem:[%s2 + $0x58] sm:$0xff]
        %v693 = vld [vmem:[%s2 + $0x60] sm:$0xff]
        %v694 = vld [vmem:[%s2 + $0x68] sm:$0xff]
        %v695 = vld [vmem:[%s2 + $0x70] sm:$0xff]
        %v696 = vld [vmem:[%s2 + $0x78] sm:$0xff]
        %698 = vset.pattern.permute.xlu0 0
        %699 = vperm.xlu0 %698, %v681
        %v700 = vpop.permute.xlu0 %699
        %703 = vset.pattern.permute.xlu0 0
        %704 = vperm.xlu0 %703, %v682
        %v705 = vpop.permute.xlu0 %704
        %708 = vset.pattern.permute.xlu0 0
        %709 = vperm.xlu0 %708, %v683
        %v710 = vpop.permute.xlu0 %709
        %713 = vset.pattern.permute.xlu0 0
        %714 = vperm.xlu0 %713, %v684
        %v715 = vpop.permute.xlu0 %714
        %718 = vset.pattern.permute.xlu0 0
        %719 = vperm.xlu0 %718, %v685
        %v720 = vpop.permute.xlu0 %719
        %723 = vset.pattern.permute.xlu0 0
        %724 = vperm.xlu0 %723, %v686
        %v725 = vpop.permute.xlu0 %724
        %728 = vset.pattern.permute.xlu0 0
        %729 = vperm.xlu0 %728, %v687
        %v730 = vpop.permute.xlu0 %729
        %733 = vset.pattern.permute.xlu0 0
        %734 = vperm.xlu0 %733, %v688
        %v735 = vpop.permute.xlu0 %734
        %738 = vset.pattern.permute.xlu0 0
        %739 = vperm.xlu0 %738, %v689
        %v740 = vpop.permute.xlu0 %739
        %743 = vset.pattern.permute.xlu0 0
        %744 = vperm.xlu0 %743, %v690
        %v745 = vpop.permute.xlu0 %744
        %748 = vset.pattern.permute.xlu0 0
        %749 = vperm.xlu0 %748, %v691
        %v750 = vpop.permute.xlu0 %749
        %753 = vset.pattern.permute.xlu0 0
        %754 = vperm.xlu0 %753, %v692
        %v755 = vpop.permute.xlu0 %754
        %758 = vset.pattern.permute.xlu0 0
        %759 = vperm.xlu0 %758, %v693
        %v760 = vpop.permute.xlu0 %759
        %763 = vset.pattern.permute.xlu0 0
        %764 = vperm.xlu0 %763, %v694
        %v765 = vpop.permute.xlu0 %764
        %768 = vset.pattern.permute.xlu0 0
        %769 = vperm.xlu0 %768, %v695
        %v770 = vpop.permute.xlu0 %769
        %773 = vset.pattern.permute.xlu0 0
        %774 = vperm.xlu0 %773, %v696
        %v775 = vpop.permute.xlu0 %774
        %v777 = vadd.f32 %v523, %v700
        %v778 = vadd.f32 %v525, %v700
        %v779 = vadd.f32 %v527, %v705
        %v780 = vadd.f32 %v529, %v705
        %v781 = vadd.f32 %v533, %v710
        %v782 = vadd.f32 %v535, %v710
        %v783 = vadd.f32 %v537, %v715
        %v784 = vadd.f32 %v539, %v715
        %v785 = vadd.f32 %v543, %v720
        %v786 = vadd.f32 %v545, %v720
        %v787 = vadd.f32 %v547, %v725
        %v788 = vadd.f32 %v549, %v725
        %v789 = vadd.f32 %v553, %v730
        %v790 = vadd.f32 %v555, %v730
        %v791 = vadd.f32 %v557, %v735
        %v792 = vadd.f32 %v559, %v735
        %v793 = vadd.f32 %v563, %v740
        %v794 = vadd.f32 %v565, %v740
        %v795 = vadd.f32 %v567, %v745
        %v796 = vadd.f32 %v569, %v745
        %v797 = vadd.f32 %v573, %v750
        %v798 = vadd.f32 %v575, %v750
        %v799 = vadd.f32 %v577, %v755
        %v800 = vadd.f32 %v579, %v755
        %v801 = vadd.f32 %v583, %v760
        %v802 = vadd.f32 %v585, %v760
        %v803 = vadd.f32 %v587, %v765
        %v804 = vadd.f32 %v589, %v765
        %v805 = vadd.f32 %v593, %v770
        %v806 = vadd.f32 %v595, %v770
        %v807 = vadd.f32 %v597, %v775
        %v808 = vadd.f32 %v599, %v775
        %v809 = vmax.f32 %v777, 0.0
        %v810 = vmax.f32 %v778, 0.0
        %v811 = vmax.f32 %v779, 0.0
        %v812 = vmax.f32 %v780, 0.0
        %v813 = vmax.f32 %v781, 0.0
        %v814 = vmax.f32 %v782, 0.0
        %v815 = vmax.f32 %v783, 0.0
        %v816 = vmax.f32 %v784, 0.0
        %v817 = vmax.f32 %v785, 0.0
        %v818 = vmax.f32 %v786, 0.0
        %v819 = vmax.f32 %v787, 0.0
        %v820 = vmax.f32 %v788, 0.0
        %v821 = vmax.f32 %v789, 0.0
        %v822 = vmax.f32 %v790, 0.0
        %v823 = vmax.f32 %v791, 0.0
        %v824 = vmax.f32 %v792, 0.0
        %v825 = vmax.f32 %v793, 0.0
        %v826 = vmax.f32 %v794, 0.0
        %v827 = vmax.f32 %v795, 0.0
        %v828 = vmax.f32 %v796, 0.0
        %v829 = vmax.f32 %v797, 0.0
        %v830 = vmax.f32 %v798, 0.0
        %v831 = vmax.f32 %v799, 0.0
        %v832 = vmax.f32 %v800, 0.0
        %v833 = vmax.f32 %v801, 0.0
        %v834 = vmax.f32 %v802, 0.0
        %v835 = vmax.f32 %v803, 0.0
        %v836 = vmax.f32 %v804, 0.0
        %v837 = vmax.f32 %v805, 0.0
        %v838 = vmax.f32 %v806, 0.0
        %v839 = vmax.f32 %v807, 0.0
        %v840 = vmax.f32 %v808, 0.0
        %v841 = vpack.c.bf16 %v811, %v809
        %v842 = vpack.c.bf16 %v812, %v810
        %v843 = vpack.c.bf16 %v815, %v813
        %v844 = vpack.c.bf16 %v816, %v814
        %v845 = vpack.c.bf16 %v819, %v817
        %v846 = vpack.c.bf16 %v820, %v818
        %v847 = vpack.c.bf16 %v823, %v821
        %v848 = vpack.c.bf16 %v824, %v822
        %v849 = vpack.c.bf16 %v827, %v825
        %v850 = vpack.c.bf16 %v828, %v826
        %v851 = vpack.c.bf16 %v831, %v829
        %v852 = vpack.c.bf16 %v832, %v830
        %v853 = vpack.c.bf16 %v835, %v833
        %v854 = vpack.c.bf16 %v836, %v834
        %v855 = vpack.c.bf16 %v839, %v837
        %v856 = vpack.c.bf16 %v840, %v838
        %v857 = vld [vmem:[%s3] sm:$0xf]
        %v858 = vld [vmem:[%s3 + $0x4] sm:$0xf]
        %v859 = vld [vmem:[%s3 + $0x8] sm:$0xf]
        %v860 = vld [vmem:[%s3 + $0xc] sm:$0xf]
        %v861 = vld [vmem:[%s3 + $0x10] sm:$0xf]
        %v862 = vld [vmem:[%s3 + $0x14] sm:$0xf]
        %v863 = vld [vmem:[%s3 + $0x18] sm:$0xf]
        %v864 = vld [vmem:[%s3 + $0x1c] sm:$0xf]
        %v865 = vld [vmem:[%s3 + $0x20] sm:$0xf]
        %v866 = vld [vmem:[%s3 + $0x24] sm:$0xf]
        %v867 = vld [vmem:[%s3 + $0x28] sm:$0xf]
        %v868 = vld [vmem:[%s3 + $0x2c] sm:$0xf]
        %v869 = vld [vmem:[%s3 + $0x30] sm:$0xf]
        %v870 = vld [vmem:[%s3 + $0x34] sm:$0xf]
        %v871 = vld [vmem:[%s3 + $0x38] sm:$0xf]
        %v872 = vld [vmem:[%s3 + $0x3c] sm:$0xf]
        %v889 = vunpack.c.l.b16 %v857
        %v890 = vunpack.c.l.b16 %v858
        %v891 = vunpack.c.l.b16 %v859
        %v892 = vunpack.c.l.b16 %v860
        %v893 = vunpack.c.l.b16 %v861
        %v894 = vunpack.c.l.b16 %v862
        %v895 = vunpack.c.l.b16 %v863
        %v896 = vunpack.c.l.b16 %v864
        %v897 = vunpack.c.l.b16 %v865
        %v898 = vunpack.c.l.b16 %v866
        %v899 = vunpack.c.l.b16 %v867
        %v900 = vunpack.c.l.b16 %v868
        %v901 = vunpack.c.l.b16 %v869
        %v902 = vunpack.c.l.b16 %v870
        %v903 = vunpack.c.l.b16 %v871
        %v904 = vunpack.c.l.b16 %v872
        %v905 = vpack.c.b16 %v890, %v889
        %v906 = vpack.c.b16 %v892, %v891
        %v907 = vpack.c.b16 %v894, %v893
        %v908 = vpack.c.b16 %v896, %v895
        %v909 = vpack.c.b16 %v898, %v897
        %v910 = vpack.c.b16 %v900, %v899
        %v911 = vpack.c.b16 %v902, %v901
        %v912 = vpack.c.b16 %v904, %v903
        %921 = vmatprep.subr.bf16.mxu0 %v842
        %922 = vmatpush1.bf16.msra.mxu0 %v841
        %923 = vmatprep.subr.bf16.mxu0 %v844
        %924 = vmatpush1.bf16.msra.mxu0 %v843
        %925 = vmatprep.subr.bf16.mxu0 %v846
        %926 = vmatpush1.bf16.msra.mxu0 %v845
        %927 = vmatprep.subr.bf16.mxu0 %v848
        %928 = vmatpush1.bf16.msra.mxu0 %v847
        %929 = vmatprep.subr.bf16.mxu0 %v850
        %930 = vmatpush1.bf16.msra.mxu0 %v849
        %931 = vmatprep.subr.bf16.mxu0 %v852
        %932 = vmatpush1.bf16.msra.mxu0 %v851
        %933 = vmatprep.subr.bf16.mxu0 %v854
        %934 = vmatpush1.bf16.msra.mxu0 %v853
        %935 = vmatprep.subr.bf16.mxu0 %v856
        %936 = vmatpush1.bf16.msra.mxu0 %v855
        %937 = vmatprep.subr.bf16.mxu0 0
        %938 = vmatpush1.bf16.msra.mxu0 0
        %939 = vmatprep.subr.bf16.mxu0 0
        %940 = vmatpush1.bf16.msra.mxu0 0
        %941 = vmatprep.subr.bf16.mxu0 0
        %942 = vmatpush1.bf16.msra.mxu0 0
        %943 = vmatprep.subr.bf16.mxu0 0
        %944 = vmatpush1.bf16.msra.mxu0 0
        %945 = vmatprep.subr.bf16.mxu0 0
        %946 = vmatpush1.bf16.msra.mxu0 0
        %947 = vmatprep.subr.bf16.mxu0 0
        %948 = vmatpush1.bf16.msra.mxu0 0
        %949 = vmatprep.subr.bf16.mxu0 0
        %950 = vmatpush1.bf16.msra.mxu0 0
        %951 = vmatprep.subr.bf16.mxu0 0
        %952 = vmatpush1.bf16.msra.mxu0 0
        %953 = vmatprep.mubr.bf16.mxu0 0
        %954 = vmatmul.mubr.bf16.gmra.mrb[0].mxu0 %v905
        %v955 = vpop.f32.mrb[0].mxu0
        %v956 = vadd.f32 %v603, %v955
        %v957 = vpop.f32.mrb[0].mxu0
        %v958 = vadd.f32 %v605, %v957
        %v959 = vpop.f32.mrb[0].mxu0
        %v960 = vadd.f32 %v607, %v959
        %v961 = vpop.f32.mrb[0].mxu0
        %v962 = vadd.f32 %v609, %v961
        %963 = vmatprep.mubr.bf16.mxu0 0
        %964 = vmatmul.mubr.bf16.gmra.mrb[0].mxu0 %v906
        %v965 = vpop.f32.mrb[0].mxu0
        %v966 = vadd.f32 %v613, %v965
        %v967 = vpop.f32.mrb[0].mxu0
        %v968 = vadd.f32 %v615, %v967
        %v969 = vpop.f32.mrb[0].mxu0
        %v970 = vadd.f32 %v617, %v969
        %v971 = vpop.f32.mrb[0].mxu0
        %v972 = vadd.f32 %v619, %v971
        %973 = vmatprep.mubr.bf16.mxu0 0
        %974 = vmatmul.mubr.bf16.gmra.mrb[0].mxu0 %v907
        %v975 = vpop.f32.mrb[0].mxu0
        %v976 = vadd.f32 %v623, %v975
        %v977 = vpop.f32.mrb[0].mxu0
        %v978 = vadd.f32 %v625, %v977
        %v979 = vpop.f32.mrb[0].mxu0
        %v980 = vadd.f32 %v627, %v979
        %v981 = vpop.f32.mrb[0].mxu0
        %v982 = vadd.f32 %v629, %v981
        %983 = vmatprep.mubr.bf16.mxu0 0
        %984 = vmatmul.mubr.bf16.gmra.mrb[0].mxu0 %v908
        %v985 = vpop.f32.mrb[0].mxu0
        %v986 = vadd.f32 %v633, %v985
        %v987 = vpop.f32.mrb[0].mxu0
        %v988 = vadd.f32 %v635, %v987
        %v989 = vpop.f32.mrb[0].mxu0
        %v990 = vadd.f32 %v637, %v989
        %v991 = vpop.f32.mrb[0].mxu0
        %v992 = vadd.f32 %v639, %v991
        %993 = vmatprep.mubr.bf16.mxu0 0
        %994 = vmatmul.mubr.bf16.gmra.mrb[0].mxu0 %v909
        %v995 = vpop.f32.mrb[0].mxu0
        %v996 = vadd.f32 %v643, %v995
        %v997 = vpop.f32.mrb[0].mxu0
        %v998 = vadd.f32 %v645, %v997
        %v999 = vpop.f32.mrb[0].mxu0
        %v1000 = vadd.f32 %v647, %v999
        %v1001 = vpop.f32.mrb[0].mxu0
        %v1002 = vadd.f32 %v649, %v1001
        %1003 = vmatprep.mubr.bf16.mxu0 0
        %1004 = vmatmul.mubr.bf16.gmra.mrb[0].mxu0 %v910
        %v1005 = vpop.f32.mrb[0].mxu0
        %v1006 = vadd.f32 %v653, %v1005
        %v1007 = vpop.f32.mrb[0].mxu0
        %v1008 = vadd.f32 %v655, %v1007
        %v1009 = vpop.f32.mrb[0].mxu0
        %v1010 = vadd.f32 %v657, %v1009
        %v1011 = vpop.f32.mrb[0].mxu0
        %v1012 = vadd.f32 %v659, %v1011
        %1013 = vmatprep.mubr.bf16.mxu0 0
        %1014 = vmatmul.mubr.bf16.gmra.mrb[0].mxu0 %v911
        %v1015 = vpop.f32.mrb[0].mxu0
        %v1016 = vadd.f32 %v663, %v1015
        %v1017 = vpop.f32.mrb[0].mxu0
        %v1018 = vadd.f32 %v665, %v1017
        %v1019 = vpop.f32.mrb[0].mxu0
        %v1020 = vadd.f32 %v667, %v1019
        %v1021 = vpop.f32.mrb[0].mxu0
        %v1022 = vadd.f32 %v669, %v1021
        %1023 = vmatprep.mubr.bf16.mxu0 0
        %1024 = vmatmul.mubr.bf16.gmra.mrb[0].mxu0 %v912
        %v1025 = vpop.f32.mrb[0].mxu0
        %v1026 = vadd.f32 %v673, %v1025
        %v1027 = vpop.f32.mrb[0].mxu0
        %v1028 = vadd.f32 %v675, %v1027
        %v1029 = vpop.f32.mrb[0].mxu0
        %v1030 = vadd.f32 %v677, %v1029
        %v1031 = vpop.f32.mrb[0].mxu0
        %v1032 = vadd.f32 %v679, %v1031
        %1033 = vdwg.mxu0
        %v1034 = vld [vmem:[%s4] sm:$0xff]
        %v1035 = vld [vmem:[%s4 + $0x8] sm:$0xff]
        %v1036 = vld [vmem:[%s4 + $0x10] sm:$0xff]
        %v1037 = vld [vmem:[%s4 + $0x18] sm:$0xff]
        %v1038 = vld [vmem:[%s4 + $0x20] sm:$0xff]
        %v1039 = vld [vmem:[%s4 + $0x28] sm:$0xff]
        %v1040 = vld [vmem:[%s4 + $0x30] sm:$0xff]
        %v1041 = vld [vmem:[%s4 + $0x38] sm:$0xff]
        %v1042 = vld [vmem:[%s4 + $0x40] sm:$0xff]
        %v1043 = vld [vmem:[%s4 + $0x48] sm:$0xff]
        %v1044 = vld [vmem:[%s4 + $0x50] sm:$0xff]
        %v1045 = vld [vmem:[%s4 + $0x58] sm:$0xff]
        %v1046 = vld [vmem:[%s4 + $0x60] sm:$0xff]
        %v1047 = vld [vmem:[%s4 + $0x68] sm:$0xff]
        %v1048 = vld [vmem:[%s4 + $0x70] sm:$0xff]
        %v1049 = vld [vmem:[%s4 + $0x78] sm:$0xff]
        %1051 = vset.pattern.permute.xlu0 0
        %1052 = vperm.xlu0 %1051, %v1034
        %v1053 = vpop.permute.xlu0 %1052
        %1056 = vset.pattern.permute.xlu0 0
        %1057 = vperm.xlu0 %1056, %v1035
        %v1058 = vpop.permute.xlu0 %1057
        %1061 = vset.pattern.permute.xlu0 0
        %1062 = vperm.xlu0 %1061, %v1036
        %v1063 = vpop.permute.xlu0 %1062
        %1066 = vset.pattern.permute.xlu0 0
        %1067 = vperm.xlu0 %1066, %v1037
        %v1068 = vpop.permute.xlu0 %1067
        %1071 = vset.pattern.permute.xlu0 0
        %1072 = vperm.xlu0 %1071, %v1038
        %v1073 = vpop.permute.xlu0 %1072
        %1076 = vset.pattern.permute.xlu0 0
        %1077 = vperm.xlu0 %1076, %v1039
        %v1078 = vpop.permute.xlu0 %1077
        %1081 = vset.pattern.permute.xlu0 0
        %1082 = vperm.xlu0 %1081, %v1040
        %v1083 = vpop.permute.xlu0 %1082
        %1086 = vset.pattern.permute.xlu0 0
        %1087 = vperm.xlu0 %1086, %v1041
        %v1088 = vpop.permute.xlu0 %1087
        %1091 = vset.pattern.permute.xlu0 0
        %1092 = vperm.xlu0 %1091, %v1042
        %v1093 = vpop.permute.xlu0 %1092
        %1096 = vset.pattern.permute.xlu0 0
        %1097 = vperm.xlu0 %1096, %v1043
        %v1098 = vpop.permute.xlu0 %1097
        %1101 = vset.pattern.permute.xlu0 0
        %1102 = vperm.xlu0 %1101, %v1044
        %v1103 = vpop.permute.xlu0 %1102
        %1106 = vset.pattern.permute.xlu0 0
        %1107 = vperm.xlu0 %1106, %v1045
        %v1108 = vpop.permute.xlu0 %1107
        %1111 = vset.pattern.permute.xlu0 0
        %1112 = vperm.xlu0 %1111, %v1046
        %v1113 = vpop.permute.xlu0 %1112
        %1116 = vset.pattern.permute.xlu0 0
        %1117 = vperm.xlu0 %1116, %v1047
        %v1118 = vpop.permute.xlu0 %1117
        %1121 = vset.pattern.permute.xlu0 0
        %1122 = vperm.xlu0 %1121, %v1048
        %v1123 = vpop.permute.xlu0 %1122
        %1126 = vset.pattern.permute.xlu0 0
        %1127 = vperm.xlu0 %1126, %v1049
        %v1128 = vpop.permute.xlu0 %1127
        %v1130 = vadd.f32 %v956, %v1053
        %v1131 = vadd.f32 %v958, %v1053
        %v1132 = vadd.f32 %v960, %v1058
        %v1133 = vadd.f32 %v962, %v1058
        %v1134 = vadd.f32 %v966, %v1063
        %v1135 = vadd.f32 %v968, %v1063
        %v1136 = vadd.f32 %v970, %v1068
        %v1137 = vadd.f32 %v972, %v1068
        %v1138 = vadd.f32 %v976, %v1073
        %v1139 = vadd.f32 %v978, %v1073
        %v1140 = vadd.f32 %v980, %v1078
        %v1141 = vadd.f32 %v982, %v1078
        %v1142 = vadd.f32 %v986, %v1083
        %v1143 = vadd.f32 %v988, %v1083
        %v1144 = vadd.f32 %v990, %v1088
        %v1145 = vadd.f32 %v992, %v1088
        %v1146 = vadd.f32 %v996, %v1093
        %v1147 = vadd.f32 %v998, %v1093
        %v1148 = vadd.f32 %v1000, %v1098
        %v1149 = vadd.f32 %v1002, %v1098
        %v1150 = vadd.f32 %v1006, %v1103
        %v1151 = vadd.f32 %v1008, %v1103
        %v1152 = vadd.f32 %v1010, %v1108
        %v1153 = vadd.f32 %v1012, %v1108
        %v1154 = vadd.f32 %v1016, %v1113
        %v1155 = vadd.f32 %v1018, %v1113
        %v1156 = vadd.f32 %v1020, %v1118
        %v1157 = vadd.f32 %v1022, %v1118
        %v1158 = vadd.f32 %v1026, %v1123
        %v1159 = vadd.f32 %v1028, %v1123
        %v1160 = vadd.f32 %v1030, %v1128
        %v1161 = vadd.f32 %v1032, %v1128
        %1162 = vst [vmem:[%s260] sm:$0xff] %v1130
        %1163 = vst [vmem:[%s260 + $0x8] sm:$0xff] %v1131
        %1164 = vst [vmem:[%s260 + $0x10] sm:$0xff] %v1132
        %1165 = vst [vmem:[%s260 + $0x18] sm:$0xff] %v1133
        %1166 = vst [vmem:[%s260 + $0x20] sm:$0xff] %v1134
        %1167 = vst [vmem:[%s260 + $0x28] sm:$0xff] %v1135
        %1168 = vst [vmem:[%s260 + $0x30] sm:$0xff] %v1136
        %1169 = vst [vmem:[%s260 + $0x38] sm:$0xff] %v1137
        %1170 = vst [vmem:[%s260 + $0x40] sm:$0xff] %v1138
        %1171 = vst [vmem:[%s260 + $0x48] sm:$0xff] %v1139
        %1172 = vst [vmem:[%s260 + $0x50] sm:$0xff] %v1140
        %1173 = vst [vmem:[%s260 + $0x58] sm:$0xff] %v1141
        %1174 = vst [vmem:[%s260 + $0x60] sm:$0xff] %v1142
        %1175 = vst [vmem:[%s260 + $0x68] sm:$0xff] %v1143
        %1176 = vst [vmem:[%s260 + $0x70] sm:$0xff] %v1144
        %1177 = vst [vmem:[%s260 + $0x78] sm:$0xff] %v1145
        %1178 = vst [vmem:[%s260 + $0x80] sm:$0xff] %v1146
        %1179 = vst [vmem:[%s260 + $0x88] sm:$0xff] %v1147
        %1180 = vst [vmem:[%s260 + $0x90] sm:$0xff] %v1148
        %1181 = vst [vmem:[%s260 + $0x98] sm:$0xff] %v1149
        %1182 = vst [vmem:[%s260 + $0xa0] sm:$0xff] %v1150
        %1183 = vst [vmem:[%s260 + $0xa8] sm:$0xff] %v1151
        %1184 = vst [vmem:[%s260 + $0xb0] sm:$0xff] %v1152
        %1185 = vst [vmem:[%s260 + $0xb8] sm:$0xff] %v1153
        %1186 = vst [vmem:[%s260 + $0xc0] sm:$0xff] %v1154
        %1187 = vst [vmem:[%s260 + $0xc8] sm:$0xff] %v1155
        %1188 = vst [vmem:[%s260 + $0xd0] sm:$0xff] %v1156
        %1189 = vst [vmem:[%s260 + $0xd8] sm:$0xff] %v1157
        %1190 = vst [vmem:[%s260 + $0xe0] sm:$0xff] %v1158
        %1191 = vst [vmem:[%s260 + $0xe8] sm:$0xff] %v1159
        %1192 = vst [vmem:[%s260 + $0xf0] sm:$0xff] %v1160
        %1193 = vst [vmem:[%s260 + $0xf8] sm:$0xff] %v1161
        %s1194 = sand.u32 %s156, 1
        %s1195 = scalar_lea.sflag [#allocation4], %s1194
        %s1196 = sand.u32 %s156, 1
        %s1197 = smul.addr %s1196, 256
        %s1198 = scalar_lea.vmem [#allocation5], %s1197
        // Predicated region
        $region45: #{tpu_custom_call.1} parent=39 // pred_check
          %p1199 = pneg %p166
        $region46: #{tpu_custom_call.1} parent=39 // pred_check_branch
          %1201 = sbr.rel (%p1199) target = $region48
        $region47: #{tpu_custom_call.1} parent=39 // pred_region
          %s1202 = smul.u32 2, %s27
          %s1204 = ssub.s32 4096, 4096
          %1205 = vsyncadd %s1195, %s1204
          %s1206 = smul.addr %s26, 64
          %s1207 = sadd.s32 %s1202, %s1206
          %s1208 = smul.addr %s1207, 128
          %s1209 = scalar_lea.hbm %s5, %s1208
          %s1210 = sshll.u32 %s1198, 4
          %s1211 = int_to_ptr.vmem [resolvable:$true] %s1210
          %1216 = dma.vmem_to_hbm [thread:$0]  %s1211, 4096, %s1209, %s1195, 256, 512, 16
        $region48: #{tpu_custom_call.1} parent=39 // pred_fallthru
          _
      $region40: #{tpu_custom_call.1} parent=5 // pred_fallthru
        _
      %p1217 = scmp.le.s32.totalorder 2, %s17
      // Predicated region
      $region49: #{tpu_custom_call.1} parent=5 // pred_check
        %p1218 = pneg %p1217
      $region50: #{tpu_custom_call.1} parent=5 // pred_check_branch
        %1220 = sbr.rel (%p1218) target = $region52
      $region51: #{tpu_custom_call.1} parent=5 // pred_region
        %s1221 = ssub.s32 %s17, 2
        // Predicated region
        $region53: #{tpu_custom_call.1} parent=51 // pred_check
          %p1222 = pneg %p172
        $region54: #{tpu_custom_call.1} parent=51 // pred_check_branch
          %1224 = sbr.rel (%p1222) target = $region56
        $region55: #{tpu_custom_call.1} parent=51 // pred_region
          %s1225 = sand.u32 %s157, 1
          %s1226 = scalar_lea.sflag [#allocation4], %s1225
          %s1227 = sand.u32 %s157, 1
          %s1228 = smul.addr %s1227, 256
          %s1229 = scalar_lea.vmem [#allocation5], %s1228
          %1230 = dma.done %s1226, 4096
        $region56: #{tpu_custom_call.1} parent=51 // pred_fallthru
          _
      $region52: #{tpu_custom_call.1} parent=5 // pred_fallthru
        _
    $region6: #{tpu_custom_call.1} parent=1 // loop_footer
      %s21 = sadd.s32 1, %s17
    $region7: #{tpu_custom_call.1} parent=1 // loop_footer_branch
      %16 = sbr.rel target = $region3
    $region8: #{tpu_custom_call.1} parent=1 // loop_exit
      _
    %1231 = vsyncpa [#allocation3], 1
    %s1232 = scalar_lea.sflag [#allocation3], 1
    %1233 = vsyncpa %s1232, 1
    %1234 = vsyncpa [#allocation4], 1
    %s1235 = scalar_lea.sflag [#allocation4], 1
    %1236 = vsyncpa %s1235, 1

</llo_original>
